<compile_context>
chip_gen: v6e
topology: v6e:2x2x1
jax: 0.10.0
libtpu: 0.0.40
codegen_flags: <defaults>
</compile_context>

<pallas_src>
import jax
import jax.numpy as jnp
import numpy as np
from jax.experimental import pallas as pl
from jax.experimental.pallas import tpu as pltpu

# ---------------- configuration (small, consistent with the module) ----------------
B = 2          # batch
N = 16         # tokens per batch
DIM = 32       # model dim (LayerNorm / Linear in-features)
HIDDEN = 64    # hidden_dim of the FeedForward
EPS = 1e-5     # nn.LayerNorm default eps

_SQRT_2_OVER_PI = 0.7978845608028654


def _gelu_tanh(x):
    # TODO(synk): nn.GELU() defaults to the exact erf formulation; Mosaic has no erf
    # lowering, so the tanh approximation is used here (and in the reference).
    return 0.5 * x * (1.0 + jnp.tanh(_SQRT_2_OVER_PI * (x + 0.044715 * x * x * x)))


# ---------------- Pallas kernel (single invocation, everything VMEM-resident) ----------------
def _ff_kernel(x_ref,              # (M, DIM)      flattened tokens, M = B*N
               gamma_ref,          # (1, DIM)      LayerNorm weight
               beta_ref,           # (1, DIM)      LayerNorm bias
               w1_ref,             # (DIM, HIDDEN) Linear1 weight, (in, out) layout
               b1_ref,             # (1, HIDDEN)
               w2_ref,             # (HIDDEN, DIM) Linear2 weight, (in, out) layout
               b2_ref,             # (1, DIM)
               o_ref):             # (M, DIM)      output
    x = x_ref[...]                                             # (M, DIM) f32

    # LayerNorm (biased variance, PyTorch convention), f32 on the VPU/EUP.
    mean = jnp.mean(x, axis=-1, keepdims=True)                 # (M, 1)
    xc = x - mean
    var = jnp.mean(xc * xc, axis=-1, keepdims=True)            # (M, 1)
    xn = xc * jax.lax.rsqrt(var + EPS)                         # rsqrt -> EUP slot
    xn = xn * gamma_ref[...] + beta_ref[...]                   # affine (lane broadcast)

    # Linear1 -> GELU -> Linear2, each as one full-slab MXU matmul.
    h = jnp.dot(xn, w1_ref[...], preferred_element_type=jnp.float32) + b1_ref[...]
    h = _gelu_tanh(h)
    y = jnp.dot(h, w2_ref[...], preferred_element_type=jnp.float32) + b2_ref[...]

    o_ref[...] = y.astype(o_ref.dtype)


def feed_forward(x, kparams):
    """FeedForward.forward equivalent.

    x:        (B, N, DIM) float32
    kparams:  dict of kernel-layout params (weights already (in, out), biases (1, dim))
    """
    bx, nx, dx = x.shape
    x2d = x.reshape(bx * nx, dx)                               # one lane-dense slab

    vmem = pl.BlockSpec(memory_space=pltpu.MemorySpace.VMEM)
    out2d = pl.pallas_call(
        _ff_kernel,
        out_shape=jax.ShapeDtypeStruct((bx * nx, dx), x.dtype),
        in_specs=[vmem] * 7,
        out_specs=vmem,
    )(x2d,
      kparams["gamma"], kparams["beta"],
      kparams["w1"], kparams["b1"],
      kparams["w2"], kparams["b2"])
    return out2d.reshape(bx, nx, dx)


# ---------------- pure-JAX reference (mirrors the PyTorch forward, eval mode) ----------------
def reference(x, pt_params):
    mean = jnp.mean(x, axis=-1, keepdims=True)
    var = jnp.mean((x - mean) ** 2, axis=-1, keepdims=True)
    xn = (x - mean) / jnp.sqrt(var + EPS)
    xn = xn * pt_params["ln_w"] + pt_params["ln_b"]
    h = xn @ pt_params["w1"].T + pt_params["b1"]
    h = _gelu_tanh(h)
    return h @ pt_params["w2"].T + pt_params["b2"]


# ---------------- main ----------------
if __name__ == "__main__":
    key = jax.random.PRNGKey(0)
    k_x, k_w1, k_b1, k_w2, k_b2, k_g, k_bt = jax.random.split(key, 7)

    x = jax.random.normal(k_x, (B, N, DIM), dtype=jnp.float32)

    # PyTorch-convention parameters (nn.Linear weight is (out_features, in_features)).
    pt_params = {
        "ln_w": 1.0 + 0.05 * jax.random.normal(k_g, (DIM,), dtype=jnp.float32),
        "ln_b": 0.05 * jax.random.normal(k_bt, (DIM,), dtype=jnp.float32),
        "w1": 0.05 * jax.random.normal(k_w1, (HIDDEN, DIM), dtype=jnp.float32),
        "b1": 0.05 * jax.random.normal(k_b1, (HIDDEN,), dtype=jnp.float32),
        "w2": 0.05 * jax.random.normal(k_w2, (DIM, HIDDEN), dtype=jnp.float32),
        "b2": 0.05 * jax.random.normal(k_b2, (DIM,), dtype=jnp.float32),
    }

    # Kernel-layout params built ONCE, outside the hot path:
    # weights pre-transposed to (in, out); 1-D vectors reshaped to (1, dim) slabs.
    kparams = {
        "gamma": pt_params["ln_w"].reshape(1, DIM),
        "beta": pt_params["ln_b"].reshape(1, DIM),
        "w1": pt_params["w1"].T,                  # (DIM, HIDDEN)
        "b1": pt_params["b1"].reshape(1, HIDDEN),
        "w2": pt_params["w2"].T,                  # (HIDDEN, DIM)
        "b2": pt_params["b2"].reshape(1, DIM),
    }

    out = jax.block_until_ready(feed_forward(x, kparams))
    ref = reference(x, pt_params)
    np.testing.assert_allclose(np.asarray(out), np.asarray(ref), rtol=1e-5, atol=1e-5)

    print("KERNEL_OK")
</pallas_src>

<mosaic_0001>
module attributes {stable_mosaic.version = 11 : i64} {
  func.func @_ff_kernel(%arg0: memref<32x32xf32, #tpu.memory_space<vmem>>, %arg1: memref<1x32xf32, #tpu.memory_space<vmem>>, %arg2: memref<1x32xf32, #tpu.memory_space<vmem>>, %arg3: memref<32x64xf32, #tpu.memory_space<vmem>>, %arg4: memref<1x64xf32, #tpu.memory_space<vmem>>, %arg5: memref<64x32xf32, #tpu.memory_space<vmem>>, %arg6: memref<1x32xf32, #tpu.memory_space<vmem>>, %arg7: memref<32x32xf32, #tpu.memory_space<vmem>>) attributes {dimension_semantics = [], scalar_prefetch = 0 : i64, scratch_operands = 0 : i64, tpu.core_type = #tpu.core_type<tc>} {
    %c0 = arith.constant 0 : index
    %c0_0 = arith.constant 0 : index
    %0 = vector.load %arg0[%c0, %c0_0] : memref<32x32xf32, #tpu.memory_space<vmem>>, vector<32x32xf32>
    %cst = arith.constant dense<0.000000e+00> : vector<32xf32>
    %1 = vector.multi_reduction <add>, %0, %cst [1] : vector<32x32xf32> to vector<32xf32>
    %2 = vector.shape_cast %1 : vector<32xf32> to vector<32x1xf32>
    %cst_1 = arith.constant 3.200000e+01 : f32
    %3 = vector.broadcast %cst_1 : f32 to vector<32x1xf32>
    %4 = arith.divf %2, %3 : vector<32x1xf32>
    %5 = vector.broadcast %4 : vector<32x1xf32> to vector<32x32xf32>
    %6 = arith.subf %0, %5 : vector<32x32xf32>
    %7 = arith.mulf %6, %6 : vector<32x32xf32>
    %cst_2 = arith.constant dense<0.000000e+00> : vector<32xf32>
    %8 = vector.multi_reduction <add>, %7, %cst_2 [1] : vector<32x32xf32> to vector<32xf32>
    %9 = vector.shape_cast %8 : vector<32xf32> to vector<32x1xf32>
    %cst_3 = arith.constant 3.200000e+01 : f32
    %10 = vector.broadcast %cst_3 : f32 to vector<32x1xf32>
    %11 = arith.divf %9, %10 : vector<32x1xf32>
    %cst_4 = arith.constant 9.99999974E-6 : f32
    %12 = vector.broadcast %cst_4 : f32 to vector<32x1xf32>
    %13 = arith.addf %11, %12 : vector<32x1xf32>
    %14 = math.rsqrt %13 : vector<32x1xf32>
    %15 = vector.broadcast %14 : vector<32x1xf32> to vector<32x32xf32>
    %16 = arith.mulf %6, %15 : vector<32x32xf32>
    %c0_5 = arith.constant 0 : index
    %c0_6 = arith.constant 0 : index
    %17 = vector.load %arg1[%c0_5, %c0_6] : memref<1x32xf32, #tpu.memory_space<vmem>>, vector<1x32xf32>
    %18 = vector.broadcast %17 : vector<1x32xf32> to vector<32x32xf32>
    %19 = arith.mulf %16, %18 : vector<32x32xf32>
    %c0_7 = arith.constant 0 : index
    %c0_8 = arith.constant 0 : index
    %20 = vector.load %arg2[%c0_7, %c0_8] : memref<1x32xf32, #tpu.memory_space<vmem>>, vector<1x32xf32>
    %21 = vector.broadcast %20 : vector<1x32xf32> to vector<32x32xf32>
    %22 = arith.addf %19, %21 : vector<32x32xf32>
    %c0_9 = arith.constant 0 : index
    %c0_10 = arith.constant 0 : index
    %23 = vector.load %arg3[%c0_9, %c0_10] : memref<32x64xf32, #tpu.memory_space<vmem>>, vector<32x64xf32>
    %cst_11 = arith.constant dense<0.000000e+00> : vector<32x64xf32>
    %24 = tpu.matmul %22, %23, %cst_11 {dimension_numbers = #tpu.dot_dimension_numbers<[1], [0], [0], [1], [0, 0, 1, 1], [], []>} : vector<32x32xf32>, vector<32x64xf32>, vector<32x64xf32> -> vector<32x64xf32>
    %c0_12 = arith.constant 0 : index
    %c0_13 = arith.constant 0 : index
    %25 = vector.load %arg4[%c0_12, %c0_13] : memref<1x64xf32, #tpu.memory_space<vmem>>, vector<1x64xf32>
    %26 = vector.broadcast %25 : vector<1x64xf32> to vector<32x64xf32>
    %27 = arith.addf %24, %26 : vector<32x64xf32>
    %cst_14 = arith.constant 5.000000e-01 : f32
    %28 = vector.broadcast %cst_14 : f32 to vector<32x64xf32>
    %29 = arith.mulf %28, %27 : vector<32x64xf32>
    %cst_15 = arith.constant 4.471500e-02 : f32
    %30 = vector.broadcast %cst_15 : f32 to vector<32x64xf32>
    %31 = arith.mulf %30, %27 : vector<32x64xf32>
    %32 = arith.mulf %31, %27 : vector<32x64xf32>
    %33 = arith.mulf %32, %27 : vector<32x64xf32>
    %34 = arith.addf %27, %33 : vector<32x64xf32>
    %cst_16 = arith.constant 0.797884583 : f32
    %35 = vector.broadcast %cst_16 : f32 to vector<32x64xf32>
    %36 = arith.mulf %35, %34 : vector<32x64xf32>
    %37 = math.tanh %36 : vector<32x64xf32>
    %cst_17 = arith.constant 1.000000e+00 : f32
    %38 = vector.broadcast %cst_17 : f32 to vector<32x64xf32>
    %39 = arith.addf %38, %37 : vector<32x64xf32>
    %40 = arith.mulf %29, %39 : vector<32x64xf32>
    %c0_18 = arith.constant 0 : index
    %c0_19 = arith.constant 0 : index
    %41 = vector.load %arg5[%c0_18, %c0_19] : memref<64x32xf32, #tpu.memory_space<vmem>>, vector<64x32xf32>
    %cst_20 = arith.constant dense<0.000000e+00> : vector<32x32xf32>
    %42 = tpu.matmul %40, %41, %cst_20 {dimension_numbers = #tpu.dot_dimension_numbers<[1], [0], [0], [1], [0, 0, 1, 1], [], []>} : vector<32x64xf32>, vector<64x32xf32>, vector<32x32xf32> -> vector<32x32xf32>
    %c0_21 = arith.constant 0 : index
    %c0_22 = arith.constant 0 : index
    %43 = vector.load %arg6[%c0_21, %c0_22] : memref<1x32xf32, #tpu.memory_space<vmem>>, vector<1x32xf32>
    %44 = vector.broadcast %43 : vector<1x32xf32> to vector<32x32xf32>
    %45 = arith.addf %42, %44 : vector<32x32xf32>
    %c0_23 = arith.constant 0 : index
    %c0_24 = arith.constant 0 : index
    %46 = vector.load %arg7[%c0_23, %c0_24] : memref<32x32xf32, #tpu.memory_space<vmem>>, vector<32x32xf32>
    tpu.vector_store %arg7[%c0_23, %c0_24], %45 {strides = array<i32>} : memref<32x32xf32, #tpu.memory_space<vmem>>, vector<32x32xf32>,
    return
  }
}

</mosaic_0001>

<llo_original>
// kernel: tpu_custom_call.1
$region0: #{tpu_custom_call.1}
  #allocation0 [shape = 'u32[]', space=smem, size = 0x4, offset = 0x4, fixed_abs, tag = 'smem constant byte address 0x4 - core index']
  #allocation1 [shape = 'u32[144,128]{1,0:T(1,128)}', space=vmem, size = 0x12000, scoped, tag = 'internal scratch']
  %s0 = inlined_call_operand.vmem [shape: f32[32,32], index: 0, kind: input, shape index: {}]
  %s1 = inlined_call_operand.vmem [shape: f32[1,32], index: 1, kind: input, shape index: {}]
  %s2 = inlined_call_operand.vmem [shape: f32[1,32], index: 2, kind: input, shape index: {}]
  %s3 = inlined_call_operand.vmem [shape: f32[32,64], index: 3, kind: input, shape index: {}]
  %s4 = inlined_call_operand.vmem [shape: f32[1,64], index: 4, kind: input, shape index: {}]
  %s5 = inlined_call_operand.vmem [shape: f32[64,32], index: 5, kind: input, shape index: {}]
  %s6 = inlined_call_operand.vmem [shape: f32[1,32], index: 6, kind: input, shape index: {}]
  %s7 = inlined_call_operand.hbm [shape: f32[32,32], index: 7, kind: output, shape index: {}]
  %s8 = sld [smem:[#allocation0]]
  $region38: #{tpu_custom_call.1} parent=0
    _
  %s10 = ssub.s32 1, %s8
  %s11 = scalar_select 0, %s10, %s8
  $region1: #{tpu_custom_call.1} parent=0
    #allocation2 [shape = 'u8[16384]{0}', space=vmem, size = 0x4000, scoped, tag = 'output window, operand 0, single buffered']
    #allocation3 [shape = 's32[1]{0}', space=sflag, size = 0x4, scoped, tag = 'scoped memory for tpu_custom_call.1']
    %12 = vsyncpa [#allocation3], 0
    // Predicated region
    $region2: #{tpu_custom_call.1} parent=1 // pred_check
      _
    $region3: #{tpu_custom_call.1} parent=1 // pred_check_branch
      %14 = sbr.rel (0) target = $region5
    $region4: #{tpu_custom_call.1} parent=1 // pred_region
      _
    $region5: #{tpu_custom_call.1} parent=1 // pred_fallthru
      _
    // Predicated region
    $region6: #{tpu_custom_call.1} parent=1 // pred_check
      _
    $region7: #{tpu_custom_call.1} parent=1 // pred_check_branch
      %16 = sbr.rel (0) target = $region9
    $region8: #{tpu_custom_call.1} parent=1 // pred_region
      _
    $region9: #{tpu_custom_call.1} parent=1 // pred_fallthru
      _
    // Predicated region
    $region10: #{tpu_custom_call.1} parent=1 // pred_check
      _
    $region11: #{tpu_custom_call.1} parent=1 // pred_check_branch
      %18 = sbr.rel (0) target = $region13
    $region12: #{tpu_custom_call.1} parent=1 // pred_region
      _
    $region13: #{tpu_custom_call.1} parent=1 // pred_fallthru
      _
    // Predicated region
    $region14: #{tpu_custom_call.1} parent=1 // pred_check
      _
    $region15: #{tpu_custom_call.1} parent=1 // pred_check_branch
      %20 = sbr.rel (0) target = $region17
    $region16: #{tpu_custom_call.1} parent=1 // pred_region
      _
    $region17: #{tpu_custom_call.1} parent=1 // pred_fallthru
      _
    // Predicated region
    $region18: #{tpu_custom_call.1} parent=1 // pred_check
      _
    $region19: #{tpu_custom_call.1} parent=1 // pred_check_branch
      %22 = sbr.rel (0) target = $region21
    $region20: #{tpu_custom_call.1} parent=1 // pred_region
      _
    $region21: #{tpu_custom_call.1} parent=1 // pred_fallthru
      _
    // Predicated region
    $region22: #{tpu_custom_call.1} parent=1 // pred_check
      _
    $region23: #{tpu_custom_call.1} parent=1 // pred_check_branch
      %24 = sbr.rel (0) target = $region25
    $region24: #{tpu_custom_call.1} parent=1 // pred_region
      _
    $region25: #{tpu_custom_call.1} parent=1 // pred_fallthru
      _
    // Predicated region
    $region26: #{tpu_custom_call.1} parent=1 // pred_check
      _
    $region27: #{tpu_custom_call.1} parent=1 // pred_check_branch
      %26 = sbr.rel (0) target = $region29
    $region28: #{tpu_custom_call.1} parent=1 // pred_region
      _
    $region29: #{tpu_custom_call.1} parent=1 // pred_fallthru
      _
    %v27 = vld [vmem:[%s0] sm:$0xff]
    %v28 = vld [vmem:[%s0 + $0x8] sm:$0xff]
    %v29 = vld [vmem:[%s0 + $0x10] sm:$0xff]
    %v30 = vld [vmem:[%s0 + $0x18] sm:$0xff]
    %vm31 = vcmask 261120
    %v32 = vsel %vm31, %v27, 0.0
    %33 = vadd.xlane.f32.xlu0 %v32
    %v34 = vpop.xlane.xlu0 %33
    %v35 = vsel %vm31, %v28, 0.0
    %36 = vadd.xlane.f32.xlu0 %v35
    %v37 = vpop.xlane.xlu0 %36
    %v38 = vsel %vm31, %v29, 0.0
    %39 = vadd.xlane.f32.xlu0 %v38
    %v40 = vpop.xlane.xlu0 %39
    %v41 = vsel %vm31, %v30, 0.0
    %42 = vadd.xlane.f32.xlu0 %v41
    %v43 = vpop.xlane.xlu0 %42
    %v44 = vrcp.pop 32.0
    %v45 = vmul.f32 %v34, %v44
    %v46 = vmul.f32 %v37, %v44
    %v47 = vmul.f32 %v40, %v44
    %v48 = vmul.f32 %v43, %v44
    %v49 = vsub.f32 %v27, %v45
    %v50 = vsub.f32 %v28, %v46
    %v51 = vsub.f32 %v29, %v47
    %v52 = vsub.f32 %v30, %v48
    %v53 = vmul.f32 %v49, %v49
    %v54 = vmul.f32 %v50, %v50
    %v55 = vmul.f32 %v51, %v51
    %v56 = vmul.f32 %v52, %v52
    %v57 = vsel %vm31, %v53, 0.0
    %58 = vadd.xlane.f32.xlu0 %v57
    %v59 = vpop.xlane.xlu0 %58
    %v60 = vsel %vm31, %v54, 0.0
    %61 = vadd.xlane.f32.xlu0 %v60
    %v62 = vpop.xlane.xlu0 %61
    %v63 = vsel %vm31, %v55, 0.0
    %64 = vadd.xlane.f32.xlu0 %v63
    %v65 = vpop.xlane.xlu0 %64
    %v66 = vsel %vm31, %v56, 0.0
    %67 = vadd.xlane.f32.xlu0 %v66
    %v68 = vpop.xlane.xlu0 %67
    %v69 = vmul.f32 %v59, %v44
    %v70 = vmul.f32 %v62, %v44
    %v71 = vmul.f32 %v65, %v44
    %v72 = vmul.f32 %v68, %v44
    %v73 = vadd.f32 %v69, 1e-05
    %v74 = vadd.f32 %v70, 1e-05
    %v75 = vadd.f32 %v71, 1e-05
    %v76 = vadd.f32 %v72, 1e-05
    %v77 = vrsqrt.pop %v73
    %v78 = vrsqrt.pop %v74
    %v79 = vrsqrt.pop %v75
    %v80 = vrsqrt.pop %v76
    %v81 = vmul.f32 %v49, %v77
    %v82 = vmul.f32 %v50, %v78
    %v83 = vmul.f32 %v51, %v79
    %v84 = vmul.f32 %v52, %v80
    %v85 = vld [vmem:[%s1] sm:$0x1]
    %v87 = vlaneseq
    %v88 = vshrl.u32 %v87, 7
    %v89 = vsub.s32 0, %v88
    %v90 = vrot.slane %v85, %v89
    %v92 = vmul.f32 %v81, %v90
    %v93 = vmul.f32 %v82, %v90
    %v94 = vmul.f32 %v83, %v90
    %v95 = vmul.f32 %v84, %v90
    %v96 = vld [vmem:[%s2] sm:$0x1]
    %v98 = vlaneseq
    %v99 = vshrl.u32 %v98, 7
    %v100 = vsub.s32 0, %v99
    %v101 = vrot.slane %v96, %v100
    %v103 = vadd.f32 %v92, %v101
    %v104 = vadd.f32 %v93, %v101
    %v105 = vadd.f32 %v94, %v101
    %v106 = vadd.f32 %v95, %v101
    %v107 = vld [vmem:[%s3] sm:$0xff]
    %v108 = vld [vmem:[%s3 + $0x8] sm:$0xff]
    %v109 = vld [vmem:[%s3 + $0x10] sm:$0xff]
    %v110 = vld [vmem:[%s3 + $0x18] sm:$0xff]
    %v111 = vld [vmem:[%s4] sm:$0x1]
    %v113 = vlaneseq
    %v114 = vshrl.u32 %v113, 7
    %v115 = vsub.s32 0, %v114
    %v116 = vrot.slane %v111, %v115
    %v119 = vsel %vm31, %v103, 0
    %v122 = vsel %vm31, %v104, 0
    %v125 = vsel %vm31, %v105, 0
    %v128 = vsel %vm31, %v106, 0
    %130 = vmatprep.subr.mxu0 0.0
    %131 = vmatpush1.msra.mxu0 0.0
    %132 = vmatprep.subr.mxu0 0.0
    %133 = vmatpush1.msra.mxu0 0.0
    %134 = vmatprep.subr.mxu0 0.0
    %135 = vmatpush1.msra.mxu0 0.0
    %136 = vmatprep.subr.mxu0 0.0
    %137 = vmatpush1.msra.mxu0 0.0
    %138 = vmatprep.subr.mxu0 0.0
    %139 = vmatpush1.msra.mxu0 0.0
    %140 = vmatprep.subr.mxu0 0.0
    %141 = vmatpush1.msra.mxu0 0.0
    %142 = vmatprep.subr.mxu0 0.0
    %143 = vmatpush1.msra.mxu0 0.0
    %144 = vmatprep.subr.mxu0 0.0
    %145 = vmatpush1.msra.mxu0 0.0
    %146 = vmatprep.subr.mxu0 0.0
    %147 = vmatpush1.msra.mxu0 0.0
    %148 = vmatprep.subr.mxu0 0.0
    %149 = vmatpush1.msra.mxu0 0.0
    %150 = vmatprep.subr.mxu0 0.0
    %151 = vmatpush1.msra.mxu0 0.0
    %152 = vmatprep.subr.mxu0 0.0
    %153 = vmatpush1.msra.mxu0 0.0
    %154 = vmatprep.subr.mxu0 0.0
    %155 = vmatpush1.msra.mxu0 %v110
    %156 = vmatprep.subr.mxu0 0.0
    %157 = vmatpush1.msra.mxu0 %v109
    %158 = vmatprep.subr.mxu0 0.0
    %159 = vmatpush1.msra.mxu0 %v108
    %160 = vmatprep.subr.mxu0 0.0
    %161 = vmatpush1.msra.mxu0 %v107
    %162 = vmatprep.subr.mxu0 0.0
    %163 = vmatpush2.msra.mxu0 0.0
    %164 = vmatprep.subr.mxu0 0.0
    %165 = vmatpush2.msra.mxu0 0.0
    %166 = vmatprep.subr.mxu0 0.0
    %167 = vmatpush2.msra.mxu0 0.0
    %168 = vmatprep.subr.mxu0 0.0
    %169 = vmatpush2.msra.mxu0 0.0
    %170 = vmatprep.subr.mxu0 0.0
    %171 = vmatpush2.msra.mxu0 0.0
    %172 = vmatprep.subr.mxu0 0.0
    %173 = vmatpush2.msra.mxu0 0.0
    %174 = vmatprep.subr.mxu0 0.0
    %175 = vmatpush2.msra.mxu0 0.0
    %176 = vmatprep.subr.mxu0 0.0
    %177 = vmatpush2.msra.mxu0 0.0
    %178 = vmatprep.subr.mxu0 0.0
    %179 = vmatpush2.msra.mxu0 0.0
    %180 = vmatprep.subr.mxu0 0.0
    %181 = vmatpush2.msra.mxu0 0.0
    %182 = vmatprep.subr.mxu0 0.0
    %183 = vmatpush2.msra.mxu0 0.0
    %184 = vmatprep.subr.mxu0 0.0
    %185 = vmatpush2.msra.mxu0 0.0
    %186 = vmatprep.subr.mxu0 0.0
    %187 = vmatpush2.msra.mxu0 0.0
    %188 = vmatprep.subr.mxu0 0.0
    %189 = vmatpush2.msra.mxu0 0.0
    %190 = vmatprep.subr.mxu0 0.0
    %191 = vmatpush2.msra.mxu0 0.0
    %192 = vmatprep.subr.mxu0 0.0
    %193 = vmatpush2.msra.mxu0 0.0
    %194 = vmatprep.mubr.f32.mxu0 0.0
    %195 = vmatmul.mubr.f32.gmra.mxu0 %v119
    %v196 = vpop.f32.mrf.mxu0
    %v197 = vadd.f32 %v116, %v196
    %v198 = vpop.f32.mrf.mxu0
    %199 = vmatprep.mubr.f32.mxu0 0.0
    %200 = vmatmul.mubr.f32.gmra.mxu0 %v122
    %v201 = vpop.f32.mrf.mxu0
    %v202 = vadd.f32 %v116, %v201
    %v203 = vpop.f32.mrf.mxu0
    %204 = vmatprep.mubr.f32.mxu0 0.0
    %205 = vmatmul.mubr.f32.gmra.mxu0 %v125
    %v206 = vpop.f32.mrf.mxu0
    %v207 = vadd.f32 %v116, %v206
    %v208 = vpop.f32.mrf.mxu0
    %209 = vmatprep.mubr.f32.mxu0 0.0
    %210 = vmatmul.mubr.f32.gmra.mxu0 %v128
    %v211 = vpop.f32.mrf.mxu0
    %v212 = vadd.f32 %v116, %v211
    %v213 = vpop.f32.mrf.mxu0
    %214 = vdwg.mxu0
    %v215 = vmul.f32 %v197, 0.5
    %v216 = vmul.f32 %v202, 0.5
    %v217 = vmul.f32 %v207, 0.5
    %v218 = vmul.f32 %v212, 0.5
    %v219 = vmul.f32 %v197, 0.044715
    %v220 = vmul.f32 %v202, 0.044715
    %v221 = vmul.f32 %v207, 0.044715
    %v222 = vmul.f32 %v212, 0.044715
    %v223 = vmul.f32 %v219, %v197
    %v224 = vmul.f32 %v220, %v202
    %v225 = vmul.f32 %v221, %v207
    %v226 = vmul.f32 %v222, %v212
    %v227 = vmul.f32 %v223, %v197
    %v228 = vmul.f32 %v224, %v202
    %v229 = vmul.f32 %v225, %v207
    %v230 = vmul.f32 %v226, %v212
    %v231 = vadd.f32 %v197, %v227
    %v232 = vadd.f32 %v202, %v228
    %v233 = vadd.f32 %v207, %v229
    %v234 = vadd.f32 %v212, %v230
    %v235 = vmul.f32 %v231, 0.7978846
    %v236 = vmul.f32 %v232, 0.7978846
    %v237 = vmul.f32 %v233, 0.7978846
    %v238 = vmul.f32 %v234, 0.7978846
    %v239 = vtanh.pop %v235
    %v240 = vtanh.pop %v236
    %v241 = vtanh.pop %v237
    %v242 = vtanh.pop %v238
    %v243 = vadd.f32 %v239, 1.0
    %v244 = vadd.f32 %v240, 1.0
    %v245 = vadd.f32 %v241, 1.0
    %v246 = vadd.f32 %v242, 1.0
    %v247 = vmul.f32 %v215, %v243
    %v248 = vmul.f32 %v216, %v244
    %v249 = vmul.f32 %v217, %v245
    %v250 = vmul.f32 %v218, %v246
    %v251 = vld [vmem:[%s5] sm:$0xff]
    %v252 = vld [vmem:[%s5 + $0x8] sm:$0xff]
    %v253 = vld [vmem:[%s5 + $0x10] sm:$0xff]
    %v254 = vld [vmem:[%s5 + $0x18] sm:$0xff]
    %v255 = vld [vmem:[%s5 + $0x20] sm:$0xff]
    %v256 = vld [vmem:[%s5 + $0x28] sm:$0xff]
    %v257 = vld [vmem:[%s5 + $0x30] sm:$0xff]
    %v258 = vld [vmem:[%s5 + $0x38] sm:$0xff]
    %v259 = vld [vmem:[%s6] sm:$0x1]
    %v261 = vlaneseq
    %v262 = vshrl.u32 %v261, 7
    %v263 = vsub.s32 0, %v262
    %v264 = vrot.slane %v259, %v263
    %vm266 = vcmask 523264
    %v268 = vsel %vm266, %v247, 0
    %v271 = vsel %vm266, %v248, 0
    %v274 = vsel %vm266, %v249, 0
    %v277 = vsel %vm266, %v250, 0
    %279 = vmatprep.subr.mxu0 0.0
    %280 = vmatpush1.msra.mxu0 0.0
    %281 = vmatprep.subr.mxu0 0.0
    %282 = vmatpush1.msra.mxu0 0.0
    %283 = vmatprep.subr.mxu0 0.0
    %284 = vmatpush1.msra.mxu0 0.0
    %285 = vmatprep.subr.mxu0 0.0
    %286 = vmatpush1.msra.mxu0 0.0
    %287 = vmatprep.subr.mxu0 0.0
    %288 = vmatpush1.msra.mxu0 0.0
    %289 = vmatprep.subr.mxu0 0.0
    %290 = vmatpush1.msra.mxu0 0.0
    %291 = vmatprep.subr.mxu0 0.0
    %292 = vmatpush1.msra.mxu0 0.0
    %293 = vmatprep.subr.mxu0 0.0
    %294 = vmatpush1.msra.mxu0 0.0
    %295 = vmatprep.subr.mxu0 0.0
    %296 = vmatpush1.msra.mxu0 %v258
    %297 = vmatprep.subr.mxu0 0.0
    %298 = vmatpush1.msra.mxu0 %v257
    %299 = vmatprep.subr.mxu0 0.0
    %300 = vmatpush1.msra.mxu0 %v256
    %301 = vmatprep.subr.mxu0 0.0
    %302 = vmatpush1.msra.mxu0 %v255
    %303 = vmatprep.subr.mxu0 0.0
    %304 = vmatpush1.msra.mxu0 %v254
    %305 = vmatprep.subr.mxu0 0.0
    %306 = vmatpush1.msra.mxu0 %v253
    %307 = vmatprep.subr.mxu0 0.0
    %308 = vmatpush1.msra.mxu0 %v252
    %309 = vmatprep.subr.mxu0 0.0
    %310 = vmatpush1.msra.mxu0 %v251
    %311 = vmatprep.subr.mxu0 0.0
    %312 = vmatpush2.msra.mxu0 0.0
    %313 = vmatprep.subr.mxu0 0.0
    %314 = vmatpush2.msra.mxu0 0.0
    %315 = vmatprep.subr.mxu0 0.0
    %316 = vmatpush2.msra.mxu0 0.0
    %317 = vmatprep.subr.mxu0 0.0
    %318 = vmatpush2.msra.mxu0 0.0
    %319 = vmatprep.subr.mxu0 0.0
    %320 = vmatpush2.msra.mxu0 0.0
    %321 = vmatprep.subr.mxu0 0.0
    %322 = vmatpush2.msra.mxu0 0.0
    %323 = vmatprep.subr.mxu0 0.0
    %324 = vmatpush2.msra.mxu0 0.0
    %325 = vmatprep.subr.mxu0 0.0
    %326 = vmatpush2.msra.mxu0 0.0
    %327 = vmatprep.subr.mxu0 0.0
    %328 = vmatpush2.msra.mxu0 0.0
    %329 = vmatprep.subr.mxu0 0.0
    %330 = vmatpush2.msra.mxu0 0.0
    %331 = vmatprep.subr.mxu0 0.0
    %332 = vmatpush2.msra.mxu0 0.0
    %333 = vmatprep.subr.mxu0 0.0
    %334 = vmatpush2.msra.mxu0 0.0
    %335 = vmatprep.subr.mxu0 0.0
    %336 = vmatpush2.msra.mxu0 0.0
    %337 = vmatprep.subr.mxu0 0.0
    %338 = vmatpush2.msra.mxu0 0.0
    %339 = vmatprep.subr.mxu0 0.0
    %340 = vmatpush2.msra.mxu0 0.0
    %341 = vmatprep.subr.mxu0 0.0
    %342 = vmatpush2.msra.mxu0 0.0
    %343 = vmatprep.mubr.f32.mxu0 0.0
    %344 = vmatmul.mubr.f32.gmra.mxu0 %v268
    %v345 = vpop.f32.mrf.mxu0
    %v346 = vadd.f32 %v264, %v345
    %v347 = vpop.f32.mrf.mxu0
    %348 = vmatprep.mubr.f32.mxu0 0.0
    %349 = vmatmul.mubr.f32.gmra.mxu0 %v271
    %v350 = vpop.f32.mrf.mxu0
    %v351 = vadd.f32 %v264, %v350
    %v352 = vpop.f32.mrf.mxu0
    %353 = vmatprep.mubr.f32.mxu0 0.0
    %354 = vmatmul.mubr.f32.gmra.mxu0 %v274
    %v355 = vpop.f32.mrf.mxu0
    %v356 = vadd.f32 %v264, %v355
    %v357 = vpop.f32.mrf.mxu0
    %358 = vmatprep.mubr.f32.mxu0 0.0
    %359 = vmatmul.mubr.f32.gmra.mxu0 %v277
    %v360 = vpop.f32.mrf.mxu0
    %v361 = vadd.f32 %v264, %v360
    %v362 = vpop.f32.mrf.mxu0
    %363 = vdwg.mxu0
    %364 = vst.msk [vmem:[#allocation2] sm:$0xff] %vm31, %v346
    %365 = vst.msk [vmem:[#allocation2 + $0x8] sm:$0xff] %vm31, %v351
    %366 = vst.msk [vmem:[#allocation2 + $0x10] sm:$0xff] %vm31, %v356
    %367 = vst.msk [vmem:[#allocation2 + $0x18] sm:$0xff] %vm31, %v361
    // Predicated region
    $region30: #{tpu_custom_call.1} parent=1 // pred_check
      _
    $region31: #{tpu_custom_call.1} parent=1 // pred_check_branch
      %369 = sbr.rel (0) target = $region33
    $region32: #{tpu_custom_call.1} parent=1 // pred_region
      %s371 = ssub.s32 512, 512
      %372 = vsyncadd [#allocation3], %s371
      %s373 = sshll.u32 [#allocation2], 4
      %s374 = int_to_ptr.vmem [resolvable:$true] %s373
      %379 = dma.vmem_to_hbm [thread:$0]  %s374, 512, %s7, [#allocation3], 128, 128, 8
    $region33: #{tpu_custom_call.1} parent=1 // pred_fallthru
      _
    // Predicated region
    $region34: #{tpu_custom_call.1} parent=1 // pred_check
      _
    $region35: #{tpu_custom_call.1} parent=1 // pred_check_branch
      %381 = sbr.rel (0) target = $region37
    $region36: #{tpu_custom_call.1} parent=1 // pred_region
      %382 = dma.done [#allocation3], 512
    $region37: #{tpu_custom_call.1} parent=1 // pred_fallthru
      _
    %383 = vsyncpa [#allocation3], 1

</llo_original>
